<compile_context>
chip_gen: v7x
topology: tpu7x:2x2x1
jax: 0.10.0
libtpu: 0.0.40
codegen_flags: <defaults>
</compile_context>

<pallas_src>
import jax
import jax.numpy as jnp
from jax.experimental import pallas as pl
from jax.experimental.pallas import tpu as pltpu


def encoder_layer_kernel(x_ref, a_ref, w_ref, o_ref):
    # x_ref/o_ref: (b_tile, L, C), a_ref: (L, L), w_ref: (C, C)
    b_tile, L, C = x_ref.shape
    x = x_ref[...]
    a = a_ref[...]
    w = w_ref[...]

    # (1) X @ W with the batch folded into the matmul M dimension:
    #     (b_tile*L, C) @ (C, C).  W stays stationary in the MXU and is reused
    #     for every row of every batch in the tile.  (Leading-dim reshape only:
    #     no lane relayout.)
    xw = jnp.dot(
        x.reshape(b_tile * L, C), w, preferred_element_type=jnp.float32
    ).reshape(b_tile, L, C)

    # (2) A @ (X @ W) as one batched matmul over the tile.  Broadcasting A once
    #     per kernel invocation keeps this in the well-supported
    #     (b,m,k)x(b,k,n) batched-matmul form.
    a_b = jnp.broadcast_to(a, (b_tile, L, L))
    axw = jnp.einsum("blm,bmc->blc", a_b, xw, preferred_element_type=jnp.float32)

    # (3) Fused residual add in f32, cast back on store.
    o_ref[...] = (axw + x.astype(jnp.float32)).astype(o_ref.dtype)


def encoder_layer(x, adj, weight, *, b_tile=None):
    """x: (B, L, C), adj: (L, L), weight: (C, C) -> (B, L, C)."""
    B, L, C = x.shape

    if b_tile is None:
        # Fold as many batches as reasonable into one grid step (amortizes the
        # per-step pipeline overhead), but keep >=2 grid steps when B > 1 so
        # the second v7x TensorCore isn't idle.  Cap the per-step x/out tiles
        # (double-buffered, in + out -> factor 4) at ~8 MiB so large inputs
        # stay inside default scoped VMEM on all generations.
        per_batch_bytes = L * C * x.dtype.itemsize
        vmem_cap = max(1, (8 * 1024 * 1024) // (4 * per_batch_bytes))
        b_tile = max(1, min(pl.cdiv(B, 2), vmem_cap))
    num_b_tiles = pl.cdiv(B, b_tile)

    # Advisory cost hint for XLA's scheduler around the custom call.
    flops = 2 * B * L * C * (L + C)  # B * (2*L*L*C + 2*L*C*C)
    bytes_accessed = (
        2 * B * L * C * x.dtype.itemsize      # x in + out
        + adj.size * adj.dtype.itemsize
        + weight.size * weight.dtype.itemsize
    )

    return pl.pallas_call(
        encoder_layer_kernel,
        out_shape=jax.ShapeDtypeStruct((B, L, C), x.dtype),
        grid_spec=pltpu.PrefetchScalarGridSpec(
            num_scalar_prefetch=0,
            grid=(num_b_tiles,),
            in_specs=[
                # Per-step batch tile of x.
                pl.BlockSpec((b_tile, L, C), lambda i: (i, 0, 0)),
                # adj / weight are grid-invariant (constant index maps) so the
                # pipeline fetches them once and never re-DMAs them.  At
                # production L/C (MiB-scale A/W), also single-buffer them or
                # hold them resident in scratch to halve their VMEM footprint.
                pl.BlockSpec((L, L), lambda i: (0, 0)),
                pl.BlockSpec((C, C), lambda i: (0, 0)),
            ],
            out_specs=pl.BlockSpec((b_tile, L, C), lambda i: (i, 0, 0)),
        ),
        compiler_params=pltpu.CompilerParams(
            dimension_semantics=("parallel",),
        ),
        cost_estimate=pl.CostEstimate(
            flops=flops, transcendentals=0, bytes_accessed=bytes_accessed
        ),
    )(x, adj, weight)


def encoder_layer_ref(x, adj, weight):
    # Pure-JAX reference ((A @ X) @ W + X) for the correctness check.
    gcn = jnp.einsum("lm,bmc->blc", adj, x) @ weight
    return gcn + x


if __name__ == "__main__":
    B, L, C = 2, 8, 32  # batch, nodes, feature dim

    key = jax.random.PRNGKey(0)
    kx, ka, kw = jax.random.split(key, 3)

    x = jax.random.normal(kx, (B, L, C), dtype=jnp.float32)

    # Deterministic "parameters" of the injected gcn_layer:
    # symmetric row-normalized adjacency + dense weight matrix.
    a_raw = jax.random.uniform(ka, (L, L), dtype=jnp.float32)
    a_sym = (a_raw + a_raw.T) * 0.5 + jnp.eye(L, dtype=jnp.float32)
    adj = a_sym / jnp.sum(a_sym, axis=-1, keepdims=True)
    weight = jax.random.normal(kw, (C, C), dtype=jnp.float32) * (1.0 / jnp.sqrt(C))

    out = jax.block_until_ready(encoder_layer(x, adj, weight))
    ref = encoder_layer_ref(x, adj, weight)

    assert out.shape == (B, L, C)
    # Kernel computes A@(X@W) (associativity-reordered for MXU efficiency) vs.
    # the reference's (A@X)@W, so allow a small f32 reassociation tolerance.
    assert jnp.allclose(out, ref, atol=1e-4, rtol=1e-4), "mismatch vs reference"

    print("KERNEL_OK")
</pallas_src>

<mosaic_0001>
module attributes {stable_mosaic.version = 11 : i64} {
  func.func @encoder_layer_kernel(%arg0: i32, %arg1: memref<1x8x32xf32, #tpu.memory_space<vmem>>, %arg2: memref<8x8xf32, #tpu.memory_space<vmem>>, %arg3: memref<32x32xf32, #tpu.memory_space<vmem>>, %arg4: memref<1x8x32xf32, #tpu.memory_space<vmem>>) attributes {dimension_semantics = [#tpu.dimension_semantics<parallel>], iteration_bounds = array<i64: 2>, scalar_prefetch = 0 : i64, scratch_operands = 0 : i64, tpu.core_type = #tpu.core_type<tc>, window_params = [{transform_indices = @transform_0, window_bounds = array<i64: 1, 8, 32>}, {pipeline_mode = #tpu.pipeline_mode<synchronous>, transform_indices = @transform_1, window_bounds = array<i64: 8, 8>}, {pipeline_mode = #tpu.pipeline_mode<synchronous>, transform_indices = @transform_2, window_bounds = array<i64: 32, 32>}, {transform_indices = @transform_3, window_bounds = array<i64: 1, 8, 32>}]} {
    %c0 = arith.constant 0 : index
    %c0_0 = arith.constant 0 : index
    %c0_1 = arith.constant 0 : index
    %0 = vector.load %arg1[%c0, %c0_0, %c0_1] : memref<1x8x32xf32, #tpu.memory_space<vmem>>, vector<1x8x32xf32>
    %c0_2 = arith.constant 0 : index
    %c0_3 = arith.constant 0 : index
    %1 = vector.load %arg2[%c0_2, %c0_3] : memref<8x8xf32, #tpu.memory_space<vmem>>, vector<8x8xf32>
    %c0_4 = arith.constant 0 : index
    %c0_5 = arith.constant 0 : index
    %2 = vector.load %arg3[%c0_4, %c0_5] : memref<32x32xf32, #tpu.memory_space<vmem>>, vector<32x32xf32>
    %3 = vector.shape_cast %0 : vector<1x8x32xf32> to vector<8x32xf32>
    %cst = arith.constant dense<0.000000e+00> : vector<8x32xf32>
    %4 = tpu.matmul %3, %2, %cst {dimension_numbers = #tpu.dot_dimension_numbers<[1], [0], [0], [1], [0, 0, 1, 1], [], []>} : vector<8x32xf32>, vector<32x32xf32>, vector<8x32xf32> -> vector<8x32xf32>
    %5 = vector.shape_cast %4 : vector<8x32xf32> to vector<1x8x32xf32>
    %6 = vector.shape_cast %1 : vector<8x8xf32> to vector<1x8x8xf32>
    "tpu.trace_start"() <{level = 10 : i32, message = "blm,bmc->blc"}> : () -> ()
    %cst_6 = arith.constant dense<0.000000e+00> : vector<1x8x32xf32>
    %7 = tpu.matmul %6, %5, %cst_6 {dimension_numbers = #tpu.dot_dimension_numbers<[2], [1], [1], [2], [0, 0, 0, 1, 1, 2], [0], [0]>} : vector<1x8x8xf32>, vector<1x8x32xf32>, vector<1x8x32xf32> -> vector<1x8x32xf32>
    "tpu.trace_stop"() : () -> ()
    %8 = arith.addf %7, %0 : vector<1x8x32xf32>
    %c0_7 = arith.constant 0 : index
    %c0_8 = arith.constant 0 : index
    %c0_9 = arith.constant 0 : index
    %9 = vector.load %arg4[%c0_7, %c0_8, %c0_9] : memref<1x8x32xf32, #tpu.memory_space<vmem>>, vector<1x8x32xf32>
    tpu.vector_store %arg4[%c0_7, %c0_8, %c0_9], %8 {strides = array<i32>} : memref<1x8x32xf32, #tpu.memory_space<vmem>>, vector<1x8x32xf32>,
    return
  }
  func.func @transform_0(%arg0: i32) -> (i32, i32, i32) {
    %c0_i32 = arith.constant 0 : i32
    %c0_i32_0 = arith.constant 0 : i32
    %c0_i32_1 = arith.constant 0 : i32
    return %arg0, %c0_i32, %c0_i32_0 : i32, i32, i32
  }
  func.func @transform_1(%arg0: i32) -> (i32, i32) {
    %c0_i32 = arith.constant 0 : i32
    %c0_i32_0 = arith.constant 0 : i32
    %c0_i32_1 = arith.constant 0 : i32
    return %c0_i32, %c0_i32_0 : i32, i32
  }
  func.func @transform_2(%arg0: i32) -> (i32, i32) {
    %c0_i32 = arith.constant 0 : i32
    %c0_i32_0 = arith.constant 0 : i32
    %c0_i32_1 = arith.constant 0 : i32
    return %c0_i32, %c0_i32_0 : i32, i32
  }
  func.func @transform_3(%arg0: i32) -> (i32, i32, i32) {
    %c0_i32 = arith.constant 0 : i32
    %c0_i32_0 = arith.constant 0 : i32
    %c0_i32_1 = arith.constant 0 : i32
    return %arg0, %c0_i32, %c0_i32_0 : i32, i32, i32
  }
}

</mosaic_0001>

<llo_original>
// kernel: tpu_custom_call.1
$region0: #{tpu_custom_call.1}
  #allocation0 [shape = 'u32[]', space=smem, size = 0x4, offset = 0x4, fixed_abs, tag = 'smem constant byte address 0x4 - core index']
  #allocation1 [shape = 'u32[144,128]{1,0:T(1,128)}', space=vmem, size = 0x12000, scoped, tag = 'internal scratch']
  %s0 = inlined_call_operand.hbm [shape: f32[2,8,32], index: 0, kind: input, shape index: {}]
  %s1 = inlined_call_operand.hbm [shape: f32[8,8], index: 1, kind: input, shape index: {}]
  %s2 = inlined_call_operand.hbm [shape: f32[32,32], index: 2, kind: input, shape index: {}]
  %s3 = inlined_call_operand.hbm [shape: f32[2,8,32], index: 3, kind: output, shape index: {}]
  %s4 = sld [smem:[#allocation0]]
  $region57: #{tpu_custom_call.1} parent=0
    _
  %s6 = ssub.s32 1, %s4
  %s7 = scalar_select 0, %s6, %s4
  $region1: #{tpu_custom_call.1} parent=0
    #allocation2 [shape = 'u8[8192]{0}', space=vmem, size = 0x2000, scoped, tag = 'input window, operand 0']
    #allocation3 [shape = 's32[2]{0}', space=sflag, size = 0x8, scoped, tag = 'scoped memory for tpu_custom_call.1']
    #allocation4 [shape = 's32[2]{0}', space=sflag, size = 0x8, scoped, tag = 'scoped memory for tpu_custom_call.1']
    #allocation5 [shape = 'u8[4096]{0}', space=vmem, size = 0x1000, scoped, tag = 'input window, operand 1, single buffered']
    #allocation6 [shape = 's32[1]{0}', space=sflag, size = 0x4, scoped, tag = 'scoped memory for tpu_custom_call.1']
    #allocation7 [shape = 'u8[16384]{0}', space=vmem, size = 0x4000, scoped, tag = 'input window, operand 2, single buffered']
    #allocation8 [shape = 'u8[8192]{0}', space=vmem, size = 0x2000, scoped, tag = 'output window, operand 0']
    %8 = vsyncpa [#allocation3], 0
    %s9 = scalar_lea.sflag [#allocation3], 1
    %10 = vsyncpa %s9, 0
    %11 = vsyncpa [#allocation6], 0
    %12 = vsyncpa [#allocation4], 0
    %s13 = scalar_lea.sflag [#allocation4], 1
    %14 = vsyncpa %s13, 0
    loop: start=0, step=1, limit=4
    $region2: #{tpu_custom_call.1} parent=1 // loop_pre_header
      _
    $region3: #{tpu_custom_call.1} parent=1 // loop_header
      %s16 = sphi 0, %s20
      %p17 = scmp.ge.s32.totalorder %s16, 4
      %s26 = sphi 0, %s28
      %s29 = sphi 0, %s26
      %s30 = sphi 0, %s29
      %s46 = sphi 0, %s30
      %s50 = sphi 0, %s50
      %s52 = sphi 0, %s50
      %s53 = sphi 0, %s52
      %s67 = sphi 0, %s53
      %s71 = sphi 0, %s71
      %s73 = sphi 0, %s71
      %s74 = sphi 0, %s73
      %s88 = sphi 0, %s74
      %s94 = sphi 0, %s96
      %s97 = sphi 0, %s94
      %s98 = sphi 0, %s97
      %s114 = sphi 0, %s98
    $region4: #{tpu_custom_call.1} parent=1 // loop_header_branch
      %19 = sbr.rel (%p17) target = $region8
    $region5: #{tpu_custom_call.1} parent=1 // loop_body
      %s21 = ssub.s32 %s16, 1
      %s22 = ssub.s32 %s16, 2
      %s23 = sadd.s32 %s16, 1
      %s24 = ssub.s32 %s16, %s23
      %p25 = scmp.eq.s32.totalorder %s24, 0
      %s27 = sadd.s32 %s26, 1
      %s28 = scalar_select %p25, %s26, %s27
      %p31 = pneg %p25
      %p32 = scmp.eq.s32.totalorder %s16, 1
      %p33 = por %p31, %p32
      %p34 = scmp.ne.s32.totalorder %s26, %s29
      %p35 = scmp.eq.s32.totalorder %s16, 0
      %p36 = por %p34, %p35
      %p37 = scmp.ne.s32.totalorder %s26, %s29
      %p38 = scmp.eq.s32.totalorder %s21, 1
      %p39 = por %p37, %p38
      %p40 = scmp.ne.s32.totalorder %s29, %s30
      %p41 = scmp.eq.s32.totalorder %s21, 0
      %p42 = por %p40, %p41
      %p43 = scmp.ne.s32.totalorder %s29, %s30
      %p44 = scmp.eq.s32.totalorder %s22, 1
      %p45 = por %p43, %p44
      %p47 = scmp.ne.s32.totalorder %s30, %s46
      %p48 = scmp.eq.s32.totalorder %s22, 0
      %p49 = por %p47, %p48
      %s51 = sadd.s32 %s50, 1
      %p54 = scmp.eq.s32.totalorder %s16, 1
      %p55 = scmp.ne.s32.totalorder %s50, %s52
      %p56 = scmp.eq.s32.totalorder %s16, 0
      %p57 = por %p55, %p56
      %p58 = scmp.ne.s32.totalorder %s50, %s52
      %p59 = scmp.eq.s32.totalorder %s21, 1
      %p60 = por %p58, %p59
      %p61 = scmp.ne.s32.totalorder %s52, %s53
      %p62 = scmp.eq.s32.totalorder %s21, 0
      %p63 = por %p61, %p62
      %p64 = scmp.ne.s32.totalorder %s52, %s53
      %p65 = scmp.eq.s32.totalorder %s22, 1
      %p66 = por %p64, %p65
      %p68 = scmp.ne.s32.totalorder %s53, %s67
      %p69 = scmp.eq.s32.totalorder %s22, 0
      %p70 = por %p68, %p69
      %s72 = sadd.s32 %s71, 1
      %p75 = scmp.eq.s32.totalorder %s16, 1
      %p76 = scmp.ne.s32.totalorder %s71, %s73
      %p77 = scmp.eq.s32.totalorder %s16, 0
      %p78 = por %p76, %p77
      %p79 = scmp.ne.s32.totalorder %s71, %s73
      %p80 = scmp.eq.s32.totalorder %s21, 1
      %p81 = por %p79, %p80
      %p82 = scmp.ne.s32.totalorder %s73, %s74
      %p83 = scmp.eq.s32.totalorder %s21, 0
      %p84 = por %p82, %p83
      %p85 = scmp.ne.s32.totalorder %s73, %s74
      %p86 = scmp.eq.s32.totalorder %s22, 1
      %p87 = por %p85, %p86
      %p89 = scmp.ne.s32.totalorder %s74, %s88
      %p90 = scmp.eq.s32.totalorder %s22, 0
      %p91 = por %p89, %p90
      %s92 = ssub.s32 %s16, %s23
      %p93 = scmp.eq.s32.totalorder %s92, 0
      %s95 = sadd.s32 %s94, 1
      %s96 = scalar_select %p93, %s94, %s95
      %p99 = pneg %p93
      %p100 = scmp.eq.s32.totalorder %s16, 1
      %p101 = por %p99, %p100
      %p102 = scmp.ne.s32.totalorder %s94, %s97
      %p103 = scmp.eq.s32.totalorder %s16, 0
      %p104 = por %p102, %p103
      %p105 = scmp.ne.s32.totalorder %s94, %s97
      %p106 = scmp.eq.s32.totalorder %s21, 1
      %p107 = por %p105, %p106
      %p108 = scmp.ne.s32.totalorder %s97, %s98
      %p109 = scmp.eq.s32.totalorder %s21, 0
      %p110 = por %p108, %p109
      %p111 = scmp.ne.s32.totalorder %s97, %s98
      %p112 = scmp.eq.s32.totalorder %s22, 1
      %p113 = por %p111, %p112
      %p115 = scmp.ne.s32.totalorder %s98, %s114
      %p116 = scmp.eq.s32.totalorder %s22, 0
      %p117 = por %p115, %p116
      %p118 = scmp.le.s32.totalorder 1, %s16
      %p119 = scmp.lt.s32.totalorder %s16, 3
      %p120 = pnand %p118, %p119
      %p121 = pneg %p120
      // Predicated region
      $region9: #{tpu_custom_call.1} parent=5 // pred_check
        _
      $region10: #{tpu_custom_call.1} parent=5 // pred_check_branch
        %123 = sbr.rel (%p120) target = $region12
      $region11: #{tpu_custom_call.1} parent=5 // pred_region
        %s124 = ssub.s32 %s16, 1
        // Predicated region
        $region13: #{tpu_custom_call.1} parent=11 // pred_check
          %p125 = pneg %p63
        $region14: #{tpu_custom_call.1} parent=11 // pred_check_branch
          %127 = sbr.rel (%p125) target = $region16
        $region15: #{tpu_custom_call.1} parent=11 // pred_region
          %s129 = ssub.s32 128, 128
          %130 = vsyncadd [#allocation6], %s129
          %s132 = sshll.u32 [#allocation5], 4
          %s133 = int_to_ptr.vmem [resolvable:$true] %s132
          %135 = dma.hbm_to_vmem [thread:$0]  %s1, 128, %s133, [#allocation6]
        $region16: #{tpu_custom_call.1} parent=11 // pred_fallthru
          _
        // Predicated region
        $region17: #{tpu_custom_call.1} parent=11 // pred_check
          %p136 = pneg %p84
        $region18: #{tpu_custom_call.1} parent=11 // pred_check_branch
          %138 = sbr.rel (%p136) target = $region20
        $region19: #{tpu_custom_call.1} parent=11 // pred_region
          %s140 = ssub.s32 512, 512
          %141 = vsyncadd [#allocation6], %s140
          %s142 = sshll.u32 [#allocation7], 4
          %s143 = int_to_ptr.vmem [resolvable:$true] %s142
          %148 = dma.hbm_to_vmem [thread:$0]  %s2, 512, %s143, [#allocation6], 128, 128, 8
        $region20: #{tpu_custom_call.1} parent=11 // pred_fallthru
          _
      $region12: #{tpu_custom_call.1} parent=5 // pred_fallthru
        _
      %p149 = scmp.lt.s32.totalorder %s16, 2
      // Predicated region
      $region21: #{tpu_custom_call.1} parent=5 // pred_check
        %p150 = pneg %p149
      $region22: #{tpu_custom_call.1} parent=5 // pred_check_branch
        %152 = sbr.rel (%p150) target = $region24
      $region23: #{tpu_custom_call.1} parent=5 // pred_region
        // Predicated region
        $region25: #{tpu_custom_call.1} parent=23 // pred_check
          %p153 = pneg %p36
        $region26: #{tpu_custom_call.1} parent=23 // pred_check_branch
          %155 = sbr.rel (%p153) target = $region28
        $region27: #{tpu_custom_call.1} parent=23 // pred_region
          %s156 = sand.u32 %s26, 1
          %s157 = scalar_lea.sflag [#allocation3], %s156
          %s158 = sand.u32 %s26, 1
          %s159 = smul.addr %s158, 8
          %s160 = scalar_lea.vmem [#allocation2], %s159
          %s162 = ssub.s32 128, 128
          %163 = vsyncadd %s157, %s162
          %s164 = smul.addr %s16, 128
          %s165 = scalar_lea.hbm %s0, %s164
          %s167 = sshll.u32 %s160, 4
          %s168 = int_to_ptr.vmem [resolvable:$true] %s167
          %170 = dma.hbm_to_vmem [thread:$0]  %s165, 128, %s168, %s157
        $region28: #{tpu_custom_call.1} parent=23 // pred_fallthru
          _
      $region24: #{tpu_custom_call.1} parent=5 // pred_fallthru
        _
      %p171 = scmp.le.s32.totalorder 1, %s16
      %p172 = scmp.lt.s32.totalorder %s16, 3
      %p173 = pnand %p171, %p172
      %p174 = pneg %p173
      // Predicated region
      $region29: #{tpu_custom_call.1} parent=5 // pred_check
        _
      $region30: #{tpu_custom_call.1} parent=5 // pred_check_branch
        %176 = sbr.rel (%p173) target = $region32
      $region31: #{tpu_custom_call.1} parent=5 // pred_region
        %s177 = ssub.s32 %s16, 1
        %s178 = sand.u32 %s29, 1
        %s179 = scalar_lea.sflag [#allocation3], %s178
        %s180 = sand.u32 %s29, 1
        %s181 = smul.addr %s180, 8
        %s182 = scalar_lea.vmem [#allocation2], %s181
        // Predicated region
        $region33: #{tpu_custom_call.1} parent=31 // pred_check
          %p183 = pneg %p42
        $region34: #{tpu_custom_call.1} parent=31 // pred_check_branch
          %185 = sbr.rel (%p183) target = $region36
        $region35: #{tpu_custom_call.1} parent=31 // pred_region
          %186 = dma.done %s179, 128
        $region36: #{tpu_custom_call.1} parent=31 // pred_fallthru
          _
        // Predicated region
        $region37: #{tpu_custom_call.1} parent=31 // pred_check
          %p187 = pneg %p63
        $region38: #{tpu_custom_call.1} parent=31 // pred_check_branch
          %189 = sbr.rel (%p187) target = $region40
        $region39: #{tpu_custom_call.1} parent=31 // pred_region
          %190 = dma.done [#allocation6], 128
        $region40: #{tpu_custom_call.1} parent=31 // pred_fallthru
          _
        // Predicated region
        $region41: #{tpu_custom_call.1} parent=31 // pred_check
          %p191 = pneg %p84
        $region42: #{tpu_custom_call.1} parent=31 // pred_check_branch
          %193 = sbr.rel (%p191) target = $region44
        $region43: #{tpu_custom_call.1} parent=31 // pred_region
          %194 = dma.done [#allocation6], 512
        $region44: #{tpu_custom_call.1} parent=31 // pred_fallthru
          _
        %s195 = sand.u32 %s29, 1
        %s196 = scalar_lea.sflag [#allocation3], %s195
        %s197 = sand.u32 %s29, 1
        %s198 = smul.addr %s197, 8
        %s199 = scalar_lea.vmem [#allocation2], %s198
        %p200 = pneg %p42
        %p201 = pneg %p39
        %p202 = pneg %p63
        %p203 = pneg %p60
        %p204 = pneg %p84
        %p205 = pneg %p81
        %p206 = pneg %p110
        %p207 = pneg %p107
        %s208 = sand.u32 %s97, 1
        %s209 = scalar_lea.sflag [#allocation4], %s208
        %s210 = sand.u32 %s97, 1
        %s211 = smul.addr %s210, 8
        %s212 = scalar_lea.vmem [#allocation8], %s211
        %v213 = vld [vmem:[%s182] sm:$0xff]
        %v214 = vld [vmem:[#allocation5] sm:$0xff]
        %v215 = vld [vmem:[#allocation7] sm:$0xff]
        %v216 = vld [vmem:[#allocation7 + $0x8] sm:$0xff]
        %v217 = vld [vmem:[#allocation7 + $0x10] sm:$0xff]
        %v218 = vld [vmem:[#allocation7 + $0x18] sm:$0xff]
        %vm219 = vcmask 261120
        %v221 = vsel %vm219, %v213, 0
        %223 = vmatprep.subr.mxu0 0.0
        %224 = vmatpush1.msra.mxu0 %v215
        %225 = vmatprep.subr.mxu0 0.0
        %226 = vmatpush1.msra.mxu0 %v216
        %227 = vmatprep.subr.mxu0 0.0
        %228 = vmatpush1.msra.mxu0 %v217
        %229 = vmatprep.subr.mxu0 0.0
        %230 = vmatpush1.msra.mxu0 %v218
        %231 = vmatprep.subr.mxu0 0.0
        %232 = vmatpush1.msra.mxu0 0.0
        %233 = vmatprep.subr.mxu0 0.0
        %234 = vmatpush1.msra.mxu0 0.0
        %235 = vmatprep.subr.mxu0 0.0
        %236 = vmatpush1.msra.mxu0 0.0
        %237 = vmatprep.subr.mxu0 0.0
        %238 = vmatpush1.msra.mxu0 0.0
        %239 = vmatprep.subr.mxu0 0.0
        %240 = vmatpush1.msra.mxu0 0.0
        %241 = vmatprep.subr.mxu0 0.0
        %242 = vmatpush1.msra.mxu0 0.0
        %243 = vmatprep.subr.mxu0 0.0
        %244 = vmatpush1.msra.mxu0 0.0
        %245 = vmatprep.subr.mxu0 0.0
        %246 = vmatpush1.msra.mxu0 0.0
        %247 = vmatprep.subr.mxu0 0.0
        %248 = vmatpush1.msra.mxu0 0.0
        %249 = vmatprep.subr.mxu0 0.0
        %250 = vmatpush1.msra.mxu0 0.0
        %251 = vmatprep.subr.mxu0 0.0
        %252 = vmatpush1.msra.mxu0 0.0
        %253 = vmatprep.subr.mxu0 0.0
        %254 = vmatpush1.msra.mxu0 0.0
        %255 = vmatprep.subr.mxu0 0.0
        %256 = vmatpush1.msra.mxu0 0.0
        %257 = vmatprep.subr.mxu0 0.0
        %258 = vmatpush1.msra.mxu0 0.0
        %259 = vmatprep.subr.mxu0 0.0
        %260 = vmatpush1.msra.mxu0 0.0
        %261 = vmatprep.subr.mxu0 0.0
        %262 = vmatpush1.msra.mxu0 0.0
        %263 = vmatprep.subr.mxu0 0.0
        %264 = vmatpush1.msra.mxu0 0.0
        %265 = vmatprep.subr.mxu0 0.0
        %266 = vmatpush1.msra.mxu0 0.0
        %267 = vmatprep.subr.mxu0 0.0
        %268 = vmatpush1.msra.mxu0 0.0
        %269 = vmatprep.subr.mxu0 0.0
        %270 = vmatpush1.msra.mxu0 0.0
        %271 = vmatprep.subr.mxu0 0.0
        %272 = vmatpush1.msra.mxu0 0.0
        %273 = vmatprep.subr.mxu0 0.0
        %274 = vmatpush1.msra.mxu0 0.0
        %275 = vmatprep.subr.mxu0 0.0
        %276 = vmatpush1.msra.mxu0 0.0
        %277 = vmatprep.subr.mxu0 0.0
        %278 = vmatpush1.msra.mxu0 0.0
        %279 = vmatprep.subr.mxu0 0.0
        %280 = vmatpush1.msra.mxu0 0.0
        %281 = vmatprep.subr.mxu0 0.0
        %282 = vmatpush1.msra.mxu0 0.0
        %283 = vmatprep.subr.mxu0 0.0
        %284 = vmatpush1.msra.mxu0 0.0
        %285 = vmatprep.subr.mxu0 0.0
        %286 = vmatpush1.msra.mxu0 0.0
        %287 = vmatprep.mubr.f32.mxu0 0.0
        %288 = vmatmul.mubr.f32.gmra.mrb[0].mxu0 %v221
        %v289 = vpop.f32.mrb[0].mxu0
        %v290 = vadd.f32 0.0, %v289
        %v291 = vpop.f32.mrb[0].mxu0
        %292 = vdwg.mxu0
        %vm293 = vcmask 64512
        %v295 = vsel %vm293, %v214, 0
        %297 = vmatprep.subr.mxu0 0.0
        %298 = vmatpush1.msra.mxu0 %v290
        %299 = vmatprep.subr.mxu0 0.0
        %300 = vmatpush1.msra.mxu0 0.0
        %301 = vmatprep.subr.mxu0 0.0
        %302 = vmatpush1.msra.mxu0 0.0
        %303 = vmatprep.subr.mxu0 0.0
        %304 = vmatpush1.msra.mxu0 0.0
        %305 = vmatprep.subr.mxu0 0.0
        %306 = vmatpush1.msra.mxu0 0.0
        %307 = vmatprep.subr.mxu0 0.0
        %308 = vmatpush1.msra.mxu0 0.0
        %309 = vmatprep.subr.mxu0 0.0
        %310 = vmatpush1.msra.mxu0 0.0
        %311 = vmatprep.subr.mxu0 0.0
        %312 = vmatpush1.msra.mxu0 0.0
        %313 = vmatprep.subr.mxu0 0.0
        %314 = vmatpush1.msra.mxu0 0.0
        %315 = vmatprep.subr.mxu0 0.0
        %316 = vmatpush1.msra.mxu0 0.0
        %317 = vmatprep.subr.mxu0 0.0
        %318 = vmatpush1.msra.mxu0 0.0
        %319 = vmatprep.subr.mxu0 0.0
        %320 = vmatpush1.msra.mxu0 0.0
        %321 = vmatprep.subr.mxu0 0.0
        %322 = vmatpush1.msra.mxu0 0.0
        %323 = vmatprep.subr.mxu0 0.0
        %324 = vmatpush1.msra.mxu0 0.0
        %325 = vmatprep.subr.mxu0 0.0
        %326 = vmatpush1.msra.mxu0 0.0
        %327 = vmatprep.subr.mxu0 0.0
        %328 = vmatpush1.msra.mxu0 0.0
        %329 = vmatprep.subr.mxu0 0.0
        %330 = vmatpush1.msra.mxu0 0.0
        %331 = vmatprep.subr.mxu0 0.0
        %332 = vmatpush1.msra.mxu0 0.0
        %333 = vmatprep.subr.mxu0 0.0
        %334 = vmatpush1.msra.mxu0 0.0
        %335 = vmatprep.subr.mxu0 0.0
        %336 = vmatpush1.msra.mxu0 0.0
        %337 = vmatprep.subr.mxu0 0.0
        %338 = vmatpush1.msra.mxu0 0.0
        %339 = vmatprep.subr.mxu0 0.0
        %340 = vmatpush1.msra.mxu0 0.0
        %341 = vmatprep.subr.mxu0 0.0
        %342 = vmatpush1.msra.mxu0 0.0
        %343 = vmatprep.subr.mxu0 0.0
        %344 = vmatpush1.msra.mxu0 0.0
        %345 = vmatprep.subr.mxu0 0.0
        %346 = vmatpush1.msra.mxu0 0.0
        %347 = vmatprep.subr.mxu0 0.0
        %348 = vmatpush1.msra.mxu0 0.0
        %349 = vmatprep.subr.mxu0 0.0
        %350 = vmatpush1.msra.mxu0 0.0
        %351 = vmatprep.subr.mxu0 0.0
        %352 = vmatpush1.msra.mxu0 0.0
        %353 = vmatprep.subr.mxu0 0.0
        %354 = vmatpush1.msra.mxu0 0.0
        %355 = vmatprep.subr.mxu0 0.0
        %356 = vmatpush1.msra.mxu0 0.0
        %357 = vmatprep.subr.mxu0 0.0
        %358 = vmatpush1.msra.mxu0 0.0
        %359 = vmatprep.subr.mxu0 0.0
        %360 = vmatpush1.msra.mxu0 0.0
        %361 = vmatprep.mubr.f32.mxu0 0.0
        %362 = vmatmul.mubr.f32.gmra.mrb[0].mxu0 %v295
        %v363 = vpop.f32.mrb[0].mxu0
        %v364 = vadd.f32 %v213, %v363
        %v365 = vpop.f32.mrb[0].mxu0
        %366 = vdwg.mxu0
        %367 = vst.msk [vmem:[%s212] sm:$0xff] %vm219, %v364
        %s368 = sand.u32 %s97, 1
        %s369 = scalar_lea.sflag [#allocation4], %s368
        %s370 = sand.u32 %s97, 1
        %s371 = smul.addr %s370, 8
        %s372 = scalar_lea.vmem [#allocation8], %s371
        // Predicated region
        $region45: #{tpu_custom_call.1} parent=31 // pred_check
          %p373 = pneg %p107
        $region46: #{tpu_custom_call.1} parent=31 // pred_check_branch
          %375 = sbr.rel (%p373) target = $region48
        $region47: #{tpu_custom_call.1} parent=31 // pred_region
          %s377 = ssub.s32 128, 128
          %378 = vsyncadd %s369, %s377
          %s379 = smul.addr %s21, 128
          %s380 = scalar_lea.hbm %s3, %s379
          %s382 = sshll.u32 %s372, 4
          %s383 = int_to_ptr.vmem [resolvable:$true] %s382
          %385 = dma.vmem_to_hbm [thread:$0]  %s383, 128, %s380, %s369
        $region48: #{tpu_custom_call.1} parent=31 // pred_fallthru
          _
      $region32: #{tpu_custom_call.1} parent=5 // pred_fallthru
        _
      %p386 = scmp.le.s32.totalorder 2, %s16
      // Predicated region
      $region49: #{tpu_custom_call.1} parent=5 // pred_check
        %p387 = pneg %p386
      $region50: #{tpu_custom_call.1} parent=5 // pred_check_branch
        %389 = sbr.rel (%p387) target = $region52
      $region51: #{tpu_custom_call.1} parent=5 // pred_region
        %s390 = ssub.s32 %s16, 2
        // Predicated region
        $region53: #{tpu_custom_call.1} parent=51 // pred_check
          %p391 = pneg %p113
        $region54: #{tpu_custom_call.1} parent=51 // pred_check_branch
          %393 = sbr.rel (%p391) target = $region56
        $region55: #{tpu_custom_call.1} parent=51 // pred_region
          %s394 = sand.u32 %s98, 1
          %s395 = scalar_lea.sflag [#allocation4], %s394
          %s396 = sand.u32 %s98, 1
          %s397 = smul.addr %s396, 8
          %s398 = scalar_lea.vmem [#allocation8], %s397
          %399 = dma.done %s395, 128
        $region56: #{tpu_custom_call.1} parent=51 // pred_fallthru
          _
      $region52: #{tpu_custom_call.1} parent=5 // pred_fallthru
        _
    $region6: #{tpu_custom_call.1} parent=1 // loop_footer
      %s20 = sadd.s32 1, %s16
    $region7: #{tpu_custom_call.1} parent=1 // loop_footer_branch
      %15 = sbr.rel target = $region3
    $region8: #{tpu_custom_call.1} parent=1 // loop_exit
      _
    %400 = vsyncpa [#allocation3], 1
    %s401 = scalar_lea.sflag [#allocation3], 1
    %402 = vsyncpa %s401, 1
    %403 = vsyncpa [#allocation6], 1
    %404 = vsyncpa [#allocation4], 1
    %s405 = scalar_lea.sflag [#allocation4], 1
    %406 = vsyncpa %s405, 1

</llo_original>
